<compile_context>
chip_gen: v6e
topology: v6e:2x2x1
jax: 0.10.0
libtpu: 0.0.40
codegen_flags: <defaults>
</compile_context>

<pallas_src>
import numpy as np
import jax
import jax.numpy as jnp
from jax.experimental import pallas as pl
from jax.experimental.pallas import tpu as pltpu

# ---------------- static "args" ----------------
LENGTH        = 8     # batch size ("length" in the module)
MAX_TOKENS    = 10
VOCAB         = 50
TEXT_ENC_DIMS = 32    # args.text_encoder_dims
TEXT_OUT_DIMS = 16    # args.text_output_dims  (== total_num_hidden)
FEAT_IN_DIMS  = 12    # args.feature_input_dims
FEAT_ENC_DIMS = 16    # args.feature_encoder_dims (must match TEXT_OUT_DIMS)
NUM_LABELS    = 3     # args.num_labels
TOTAL_HIDDEN  = TEXT_OUT_DIMS
HALF_HIDDEN   = TOTAL_HIDDEN // 2
NT            = LENGTH * MAX_TOKENS   # 80 flattened tokens

# ---- packed weight-slab row offsets (all 8-row aligned), 128 lanes wide ----
R_TOK   = 0      # tok_emb        (VOCAB, 32)
R_WPOOL = 56     # w_pool         (32, 32)
R_WAFT  = 88     # w_after_cat    (32, 48)   per-label after_trans weights, lane-concat
R_WFEAT = 120    # w_feat         (12, 16)
R_W1BD  = 136    # w1 block-diag  (48, 24)
R_W1HC  = 184    # w1 h-concat    (16, 24)   residual folding matrix
R_W2BD  = 200    # w2 block-diag  (24, 3)
W_ROWS  = 224

# ---- packed bias-slab rows (8, 128) ----
BR_POOL, BR_AFT, BR_FEAT, BR_B1, BR_B2, BR_TYPE0, BR_TYPED = 0, 1, 2, 3, 4, 5, 6


# ---------------- Pallas kernel (entire post-checkpoint forward) ----------------
def net_kernel(idt_ref, mask_ref, feat_ref, w_ref, b_ref, out_ref):
    """Fully fused Net.forward for all labels at once.

    idt   : (L*T, 2) int32   col 0 = token ids, col 1 = token type ids (0/1)
    mask  : (1, L*T) f32     attention mask, flattened
    feat  : (L, FEAT_IN_DIMS) f32
    w     : (W_ROWS, 128) f32 packed weight slab (see R_* offsets)
    b     : (8, 128) f32 packed bias slab (see BR_* rows)
    out   : (L, NUM_LABELS) f32
    """
    # --- stand-in BERT embedding: one-hot token lookup on the MXU ---
    ids_col  = idt_ref[:, 0:1]                                          # (NT,1) i32
    type_col = idt_ref[:, 1:2].astype(jnp.float32)                      # (NT,1) f32 in {0,1}
    vocab_iota = jax.lax.broadcasted_iota(jnp.int32, (NT, VOCAB), 1)
    one_hot = (ids_col == vocab_iota).astype(jnp.float32)               # (NT, VOCAB)
    tok_emb = w_ref[R_TOK:R_TOK + VOCAB, 0:TEXT_ENC_DIMS]               # (VOCAB, 32)
    emb = jnp.dot(one_hot, tok_emb, preferred_element_type=jnp.float32)  # (NT, 32)
    t0 = b_ref[BR_TYPE0:BR_TYPE0 + 1, 0:TEXT_ENC_DIMS]                  # type_emb[0]
    td = b_ref[BR_TYPED:BR_TYPED + 1, 0:TEXT_ENC_DIMS]                  # type_emb[1]-type_emb[0]
    emb = emb + t0 + type_col * td                                      # (NT, 32)

    # --- masked mean pooling via a (L, NT) pooling matrix (MXU, no gather) ---
    mask_row = mask_ref[...]                                            # (1, NT)
    col = jax.lax.broadcasted_iota(jnp.int32, (LENGTH, NT), 1)
    row = jax.lax.broadcasted_iota(jnp.int32, (LENGTH, NT), 0)
    lo = row * MAX_TOKENS
    in_seg = jnp.logical_and(col >= lo, col < lo + MAX_TOKENS)
    pool_mat = jnp.where(in_seg, mask_row, 0.0)                         # (L, NT)
    pooled_sum = jnp.dot(pool_mat, emb, preferred_element_type=jnp.float32)  # (L, 32)
    denom = jnp.maximum(jnp.sum(pool_mat, axis=1, keepdims=True), 1.0)  # (L, 1)
    pooled = pooled_sum / denom                                         # (L, 32)

    # --- stand-in BERT pooler: tanh(pooled @ w_pool + b_pool)  (tanh -> EUP) ---
    w_pool = w_ref[R_WPOOL:R_WPOOL + TEXT_ENC_DIMS, 0:TEXT_ENC_DIMS]
    b_pool = b_ref[BR_POOL:BR_POOL + 1, 0:TEXT_ENC_DIMS]
    x_text = jnp.tanh(
        jnp.dot(pooled, w_pool, preferred_element_type=jnp.float32) + b_pool)  # (L, 32)

    # --- feature encoder: Linear -> ReLU -> Dropout(identity at eval) ---
    w_feat = w_ref[R_WFEAT:R_WFEAT + FEAT_IN_DIMS, 0:FEAT_ENC_DIMS]
    b_feat = b_ref[BR_FEAT:BR_FEAT + 1, 0:FEAT_ENC_DIMS]
    xf = jnp.maximum(
        jnp.dot(feat_ref[...], w_feat, preferred_element_type=jnp.float32) + b_feat,
        0.0)                                                            # (L, 16)

    # --- after_trans layers for ALL labels in one GEMM: Linear -> ReLU ---
    w_aft = w_ref[R_WAFT:R_WAFT + TEXT_ENC_DIMS, 0:NUM_LABELS * TEXT_OUT_DIMS]
    b_aft = b_ref[BR_AFT:BR_AFT + 1, 0:NUM_LABELS * TEXT_OUT_DIMS]
    xt = jnp.maximum(
        jnp.dot(x_text, w_aft, preferred_element_type=jnp.float32) + b_aft,
        0.0)                                                            # (L, 48)

    # --- task fcs1 (block-diag) with the feature residual folded in (no tile) ---
    w1_bd = w_ref[R_W1BD:R_W1BD + NUM_LABELS * TOTAL_HIDDEN, 0:NUM_LABELS * HALF_HIDDEN]
    w1_hc = w_ref[R_W1HC:R_W1HC + FEAT_ENC_DIMS, 0:NUM_LABELS * HALF_HIDDEN]
    b1 = b_ref[BR_B1:BR_B1 + 1, 0:NUM_LABELS * HALF_HIDDEN]
    h = (jnp.dot(xt, w1_bd, preferred_element_type=jnp.float32)
         + jnp.dot(xf, w1_hc, preferred_element_type=jnp.float32) + b1)
    h = jnp.maximum(h, 0.0)                                             # (L, 24)

    # --- task fcs2 (block-diag) -> logits ---
    w2_bd = w_ref[R_W2BD:R_W2BD + NUM_LABELS * HALF_HIDDEN, 0:NUM_LABELS]
    b2 = b_ref[BR_B2:BR_B2 + 1, 0:NUM_LABELS]
    y = jnp.dot(h, w2_bd, preferred_element_type=jnp.float32) + b2
    out_ref[...] = y.astype(out_ref.dtype)                              # (L, 3)


# ---------------- single-call forward wrapper (jitted once) ----------------
def net_forward(x_input_ids, x_input_type_ids, x_input_mask, x_input_feats,
                w_slab, b_slab):
    idt = jnp.stack(
        [x_input_ids.reshape(NT), x_input_type_ids.reshape(NT)],
        axis=1).astype(jnp.int32)                                       # (NT, 2)
    mask_flat = x_input_mask.astype(jnp.float32).reshape(1, NT)         # (1, NT)
    vmem = pl.BlockSpec(memory_space=pltpu.MemorySpace.VMEM)
    return pl.pallas_call(
        net_kernel,
        out_shape=jax.ShapeDtypeStruct((LENGTH, NUM_LABELS), jnp.float32),
        in_specs=[vmem] * 5,
        out_specs=vmem,
        cost_estimate=pl.CostEstimate(
            flops=370_000, transcendentals=LENGTH * TEXT_ENC_DIMS,
            bytes_accessed=130_000),
    )(idt, mask_flat, x_input_feats.astype(jnp.float32), w_slab, b_slab)


net_forward_jit = jax.jit(net_forward)


# ---------------- host-side weight packing (done ONCE, numpy) ----------------
def build_slabs(params, enc_params):
    w = np.zeros((W_ROWS, 128), np.float32)

    def put(r, a):
        a = np.asarray(a, np.float32)
        w[r:r + a.shape[0], :a.shape[1]] = a

    put(R_TOK, enc_params["tok_emb"])
    put(R_WPOOL, enc_params["w_pool"])
    put(R_WAFT, np.concatenate(
        [np.asarray(params["w_after"][l]) for l in range(NUM_LABELS)], axis=1))
    put(R_WFEAT, params["w_feat"])

    w1_bd = np.zeros((NUM_LABELS * TOTAL_HIDDEN, NUM_LABELS * HALF_HIDDEN), np.float32)
    for l in range(NUM_LABELS):
        w1_bd[l * TOTAL_HIDDEN:(l + 1) * TOTAL_HIDDEN,
              l * HALF_HIDDEN:(l + 1) * HALF_HIDDEN] = np.asarray(params["w1"][l])
    put(R_W1BD, w1_bd)
    put(R_W1HC, np.concatenate(
        [np.asarray(params["w1"][l]) for l in range(NUM_LABELS)], axis=1))

    w2_bd = np.zeros((NUM_LABELS * HALF_HIDDEN, NUM_LABELS), np.float32)
    for l in range(NUM_LABELS):
        w2_bd[l * HALF_HIDDEN:(l + 1) * HALF_HIDDEN, l:l + 1] = np.asarray(params["w2"][l])
    put(R_W2BD, w2_bd)

    b = np.zeros((8, 128), np.float32)
    b[BR_POOL, :TEXT_ENC_DIMS] = np.asarray(enc_params["b_pool"]).reshape(-1)
    b[BR_AFT, :NUM_LABELS * TEXT_OUT_DIMS] = np.asarray(params["b_after"]).reshape(-1)
    b[BR_FEAT, :FEAT_ENC_DIMS] = np.asarray(params["b_feat"]).reshape(-1)
    b[BR_B1, :NUM_LABELS * HALF_HIDDEN] = np.asarray(params["b1"]).reshape(-1)
    b[BR_B2, :NUM_LABELS] = np.asarray(params["b2"]).reshape(-1)
    te = np.asarray(enc_params["type_emb"], np.float32)
    b[BR_TYPE0, :TEXT_ENC_DIMS] = te[0]
    b[BR_TYPED, :TEXT_ENC_DIMS] = te[1] - te[0]
    return jnp.asarray(w), jnp.asarray(b)


# ---------------- pure-JAX reference (per-label, unfused) ----------------
def net_forward_ref(ids, type_ids, mask, feats, params, enc_params):
    emb = enc_params["tok_emb"][ids] + enc_params["type_emb"][type_ids]   # (L, T, D)
    m = mask.astype(jnp.float32)[..., None]
    pooled = (emb * m).sum(axis=1) / jnp.maximum(m.sum(axis=1), 1.0)      # (L, D)
    x_text = jnp.tanh(pooled @ enc_params["w_pool"] + enc_params["b_pool"])
    xf = jnp.maximum(feats @ params["w_feat"] + params["b_feat"], 0.0)
    cols = []
    for l in range(NUM_LABELS):
        xt = jnp.maximum(x_text @ params["w_after"][l] + params["b_after"][l], 0.0)
        xl = xt + xf
        h = jnp.maximum(xl @ params["w1"][l] + params["b1"][l], 0.0)
        cols.append(h @ params["w2"][l] + params["b2"][l])
    return jnp.concatenate(cols, axis=1)


# ---------------- deterministic parameter init ----------------
def init_params(key):
    ks = jax.random.split(key, 12)
    s = 0.1
    return {
        "w_after": s * jax.random.normal(ks[0], (NUM_LABELS, TEXT_ENC_DIMS, TEXT_OUT_DIMS), jnp.float32),
        "b_after": s * jax.random.normal(ks[1], (NUM_LABELS, TEXT_OUT_DIMS), jnp.float32),
        "w_feat":  s * jax.random.normal(ks[2], (FEAT_IN_DIMS, FEAT_ENC_DIMS), jnp.float32),
        "b_feat":  s * jax.random.normal(ks[3], (1, FEAT_ENC_DIMS), jnp.float32),
        "w1":      s * jax.random.normal(ks[4], (NUM_LABELS, TOTAL_HIDDEN, HALF_HIDDEN), jnp.float32),
        "b1":      s * jax.random.normal(ks[5], (NUM_LABELS, HALF_HIDDEN), jnp.float32),
        "w2":      s * jax.random.normal(ks[6], (NUM_LABELS, HALF_HIDDEN, 1), jnp.float32),
        "b2":      s * jax.random.normal(ks[7], (NUM_LABELS, 1), jnp.float32),
    }, {
        "tok_emb":  s * jax.random.normal(ks[8],  (VOCAB, TEXT_ENC_DIMS), jnp.float32),
        "type_emb": s * jax.random.normal(ks[9],  (2, TEXT_ENC_DIMS), jnp.float32),
        "w_pool":   s * jax.random.normal(ks[10], (TEXT_ENC_DIMS, TEXT_ENC_DIMS), jnp.float32),
        "b_pool":   s * jax.random.normal(ks[11], (TEXT_ENC_DIMS,), jnp.float32),
    }


if __name__ == "__main__":
    key = jax.random.PRNGKey(0)
    k_ids, k_type, k_len, k_feat, k_par = jax.random.split(key, 5)

    x_input_ids = jax.random.randint(k_ids, (LENGTH, MAX_TOKENS), 0, VOCAB, dtype=jnp.int32)
    x_input_type_ids = jax.random.randint(k_type, (LENGTH, MAX_TOKENS), 0, 2, dtype=jnp.int32)
    lens = jax.random.randint(k_len, (LENGTH,), 3, MAX_TOKENS + 1, dtype=jnp.int32)
    x_input_mask = (jnp.arange(MAX_TOKENS, dtype=jnp.int32)[None, :] < lens[:, None]).astype(jnp.int32)
    x_input_feats = jax.random.normal(k_feat, (LENGTH, FEAT_IN_DIMS), dtype=jnp.float32)

    params, enc_params = init_params(k_par)

    # Fused/packed parameters: computed once on the host, reused every call.
    w_slab, b_slab = build_slabs(params, enc_params)

    out = net_forward_jit(x_input_ids, x_input_type_ids, x_input_mask,
                          x_input_feats, w_slab, b_slab)
    out = jax.block_until_ready(out)
    assert out.shape == (LENGTH, NUM_LABELS), out.shape

    ref = net_forward_ref(x_input_ids, x_input_type_ids, x_input_mask,
                          x_input_feats, params, enc_params)
    assert jnp.allclose(out, ref, rtol=1e-3, atol=1e-3), (out, ref)

    print("KERNEL_OK")
</pallas_src>

<mosaic_0001>
module attributes {stable_mosaic.version = 11 : i64} {
  func.func @net_kernel(%arg0: memref<80x2xi32, #tpu.memory_space<vmem>>, %arg1: memref<1x80xf32, #tpu.memory_space<vmem>>, %arg2: memref<8x12xf32, #tpu.memory_space<vmem>>, %arg3: memref<224x128xf32, #tpu.memory_space<vmem>>, %arg4: memref<8x128xf32, #tpu.memory_space<vmem>>, %arg5: memref<8x3xf32, #tpu.memory_space<vmem>>) attributes {dimension_semantics = [], scalar_prefetch = 0 : i64, scratch_operands = 0 : i64, tpu.core_type = #tpu.core_type<tc>} {
    %c0 = arith.constant 0 : index
    %c0_0 = arith.constant 0 : index
    %0 = vector.load %arg0[%c0, %c0_0] : memref<80x2xi32, #tpu.memory_space<vmem>>, vector<80x1xi32>
    %c0_1 = arith.constant 0 : index
    %c1 = arith.constant 1 : index
    %1 = vector.load %arg0[%c0_1, %c1] : memref<80x2xi32, #tpu.memory_space<vmem>>, vector<80x1xi32>
    %2 = arith.sitofp %1 : vector<80x1xi32> to vector<80x1xf32>
    %3 = tpu.iota {dimensions = array<i32: 1>} : vector<80x50xi32>
    %4 = vector.broadcast %0 : vector<80x1xi32> to vector<80x50xi32>
    %5 = arith.cmpi eq, %4, %3 : vector<80x50xi32>
    %6 = arith.extui %5 : vector<80x50xi1> to vector<80x50xi32>
    %7 = arith.sitofp %6 : vector<80x50xi32> to vector<80x50xf32>
    %c0_2 = arith.constant 0 : index
    %c0_3 = arith.constant 0 : index
    %8 = vector.load %arg3[%c0_2, %c0_3] : memref<224x128xf32, #tpu.memory_space<vmem>>, vector<50x32xf32>
    %cst = arith.constant dense<0.000000e+00> : vector<80x32xf32>
    %9 = tpu.matmul %7, %8, %cst {dimension_numbers = #tpu.dot_dimension_numbers<[1], [0], [0], [1], [0, 0, 1, 1], [], []>} : vector<80x50xf32>, vector<50x32xf32>, vector<80x32xf32> -> vector<80x32xf32>
    %c5 = arith.constant 5 : index
    %c0_4 = arith.constant 0 : index
    %10 = vector.load %arg4[%c5, %c0_4] : memref<8x128xf32, #tpu.memory_space<vmem>>, vector<1x32xf32>
    %c6 = arith.constant 6 : index
    %c0_5 = arith.constant 0 : index
    %11 = vector.load %arg4[%c6, %c0_5] : memref<8x128xf32, #tpu.memory_space<vmem>>, vector<1x32xf32>
    %12 = vector.broadcast %10 : vector<1x32xf32> to vector<80x32xf32>
    %13 = arith.addf %9, %12 : vector<80x32xf32>
    %14 = vector.broadcast %2 : vector<80x1xf32> to vector<80x32xf32>
    %15 = vector.broadcast %11 : vector<1x32xf32> to vector<80x32xf32>
    %16 = arith.mulf %14, %15 : vector<80x32xf32>
    %17 = arith.addf %13, %16 : vector<80x32xf32>
    %c0_6 = arith.constant 0 : index
    %c0_7 = arith.constant 0 : index
    %18 = vector.load %arg1[%c0_6, %c0_7] : memref<1x80xf32, #tpu.memory_space<vmem>>, vector<1x80xf32>
    %19 = tpu.iota {dimensions = array<i32: 1>} : vector<8x80xi32>
    %20 = tpu.iota {dimensions = array<i32: 0>} : vector<8x80xi32>
    %c10_i32 = arith.constant 10 : i32
    %21 = vector.broadcast %c10_i32 : i32 to vector<8x80xi32>
    %22 = arith.muli %20, %21 : vector<8x80xi32>
    %23 = arith.cmpi sge, %19, %22 : vector<8x80xi32>
    %c10_i32_8 = arith.constant 10 : i32
    %24 = vector.broadcast %c10_i32_8 : i32 to vector<8x80xi32>
    %25 = arith.addi %22, %24 : vector<8x80xi32>
    %26 = arith.cmpi slt, %19, %25 : vector<8x80xi32>
    %27 = arith.andi %23, %26 : vector<8x80xi1>
    %cst_9 = arith.constant 0.000000e+00 : f32
    %28 = vector.shape_cast %18 : vector<1x80xf32> to vector<1x80xf32>
    %29 = vector.broadcast %28 : vector<1x80xf32> to vector<8x80xf32>
    %30 = vector.broadcast %cst_9 : f32 to vector<8x80xf32>
    %31 = arith.select %27, %29, %30 : vector<8x80xi1>, vector<8x80xf32>
    %cst_10 = arith.constant dense<0.000000e+00> : vector<8x32xf32>
    %32 = tpu.matmul %31, %17, %cst_10 {dimension_numbers = #tpu.dot_dimension_numbers<[1], [0], [0], [1], [0, 0, 1, 1], [], []>} : vector<8x80xf32>, vector<80x32xf32>, vector<8x32xf32> -> vector<8x32xf32>
    %cst_11 = arith.constant dense<0.000000e+00> : vector<8xf32>
    %33 = vector.multi_reduction <add>, %31, %cst_11 [1] : vector<8x80xf32> to vector<8xf32>
    %34 = vector.shape_cast %33 : vector<8xf32> to vector<8x1xf32>
    %cst_12 = arith.constant 1.000000e+00 : f32
    %35 = vector.broadcast %cst_12 : f32 to vector<8x1xf32>
    %36 = arith.maximumf %34, %35 : vector<8x1xf32>
    %37 = vector.broadcast %36 : vector<8x1xf32> to vector<8x32xf32>
    %38 = arith.divf %32, %37 : vector<8x32xf32>
    %c56 = arith.constant 56 : index
    %c0_13 = arith.constant 0 : index
    %39 = vector.load %arg3[%c56, %c0_13] : memref<224x128xf32, #tpu.memory_space<vmem>>, vector<32x32xf32>
    %c0_14 = arith.constant 0 : index
    %c0_15 = arith.constant 0 : index
    %40 = vector.load %arg4[%c0_14, %c0_15] : memref<8x128xf32, #tpu.memory_space<vmem>>, vector<1x32xf32>
    %cst_16 = arith.constant dense<0.000000e+00> : vector<8x32xf32>
    %41 = tpu.matmul %38, %39, %cst_16 {dimension_numbers = #tpu.dot_dimension_numbers<[1], [0], [0], [1], [0, 0, 1, 1], [], []>} : vector<8x32xf32>, vector<32x32xf32>, vector<8x32xf32> -> vector<8x32xf32>
    %42 = vector.broadcast %40 : vector<1x32xf32> to vector<8x32xf32>
    %43 = arith.addf %41, %42 : vector<8x32xf32>
    %44 = math.tanh %43 : vector<8x32xf32>
    %c120 = arith.constant 120 : index
    %c0_17 = arith.constant 0 : index
    %45 = vector.load %arg3[%c120, %c0_17] : memref<224x128xf32, #tpu.memory_space<vmem>>, vector<12x16xf32>
    %c2 = arith.constant 2 : index
    %c0_18 = arith.constant 0 : index
    %46 = vector.load %arg4[%c2, %c0_18] : memref<8x128xf32, #tpu.memory_space<vmem>>, vector<1x16xf32>
    %c0_19 = arith.constant 0 : index
    %c0_20 = arith.constant 0 : index
    %47 = vector.load %arg2[%c0_19, %c0_20] : memref<8x12xf32, #tpu.memory_space<vmem>>, vector<8x12xf32>
    %cst_21 = arith.constant dense<0.000000e+00> : vector<8x16xf32>
    %48 = tpu.matmul %47, %45, %cst_21 {dimension_numbers = #tpu.dot_dimension_numbers<[1], [0], [0], [1], [0, 0, 1, 1], [], []>} : vector<8x12xf32>, vector<12x16xf32>, vector<8x16xf32> -> vector<8x16xf32>
    %49 = vector.broadcast %46 : vector<1x16xf32> to vector<8x16xf32>
    %50 = arith.addf %48, %49 : vector<8x16xf32>
    %cst_22 = arith.constant 0.000000e+00 : f32
    %51 = vector.broadcast %cst_22 : f32 to vector<8x16xf32>
    %52 = arith.maximumf %50, %51 : vector<8x16xf32>
    %c88 = arith.constant 88 : index
    %c0_23 = arith.constant 0 : index
    %53 = vector.load %arg3[%c88, %c0_23] : memref<224x128xf32, #tpu.memory_space<vmem>>, vector<32x48xf32>
    %c1_24 = arith.constant 1 : index
    %c0_25 = arith.constant 0 : index
    %54 = vector.load %arg4[%c1_24, %c0_25] : memref<8x128xf32, #tpu.memory_space<vmem>>, vector<1x48xf32>
    %cst_26 = arith.constant dense<0.000000e+00> : vector<8x48xf32>
    %55 = tpu.matmul %44, %53, %cst_26 {dimension_numbers = #tpu.dot_dimension_numbers<[1], [0], [0], [1], [0, 0, 1, 1], [], []>} : vector<8x32xf32>, vector<32x48xf32>, vector<8x48xf32> -> vector<8x48xf32>
    %56 = vector.broadcast %54 : vector<1x48xf32> to vector<8x48xf32>
    %57 = arith.addf %55, %56 : vector<8x48xf32>
    %cst_27 = arith.constant 0.000000e+00 : f32
    %58 = vector.broadcast %cst_27 : f32 to vector<8x48xf32>
    %59 = arith.maximumf %57, %58 : vector<8x48xf32>
    %c136 = arith.constant 136 : index
    %c0_28 = arith.constant 0 : index
    %60 = vector.load %arg3[%c136, %c0_28] : memref<224x128xf32, #tpu.memory_space<vmem>>, vector<48x24xf32>
    %c184 = arith.constant 184 : index
    %c0_29 = arith.constant 0 : index
    %61 = vector.load %arg3[%c184, %c0_29] : memref<224x128xf32, #tpu.memory_space<vmem>>, vector<16x24xf32>
    %c3 = arith.constant 3 : index
    %c0_30 = arith.constant 0 : index
    %62 = vector.load %arg4[%c3, %c0_30] : memref<8x128xf32, #tpu.memory_space<vmem>>, vector<1x24xf32>
    %cst_31 = arith.constant dense<0.000000e+00> : vector<8x24xf32>
    %63 = tpu.matmul %59, %60, %cst_31 {dimension_numbers = #tpu.dot_dimension_numbers<[1], [0], [0], [1], [0, 0, 1, 1], [], []>} : vector<8x48xf32>, vector<48x24xf32>, vector<8x24xf32> -> vector<8x24xf32>
    %cst_32 = arith.constant dense<0.000000e+00> : vector<8x24xf32>
    %64 = tpu.matmul %52, %61, %cst_32 {dimension_numbers = #tpu.dot_dimension_numbers<[1], [0], [0], [1], [0, 0, 1, 1], [], []>} : vector<8x16xf32>, vector<16x24xf32>, vector<8x24xf32> -> vector<8x24xf32>
    %65 = arith.addf %63, %64 : vector<8x24xf32>
    %66 = vector.broadcast %62 : vector<1x24xf32> to vector<8x24xf32>
    %67 = arith.addf %65, %66 : vector<8x24xf32>
    %cst_33 = arith.constant 0.000000e+00 : f32
    %68 = vector.broadcast %cst_33 : f32 to vector<8x24xf32>
    %69 = arith.maximumf %67, %68 : vector<8x24xf32>
    %c200 = arith.constant 200 : index
    %c0_34 = arith.constant 0 : index
    %70 = vector.load %arg3[%c200, %c0_34] : memref<224x128xf32, #tpu.memory_space<vmem>>, vector<24x3xf32>
    %c4 = arith.constant 4 : index
    %c0_35 = arith.constant 0 : index
    %71 = vector.load %arg4[%c4, %c0_35] : memref<8x128xf32, #tpu.memory_space<vmem>>, vector<1x3xf32>
    %cst_36 = arith.constant dense<0.000000e+00> : vector<8x3xf32>
    %72 = tpu.matmul %69, %70, %cst_36 {dimension_numbers = #tpu.dot_dimension_numbers<[1], [0], [0], [1], [0, 0, 1, 1], [], []>} : vector<8x24xf32>, vector<24x3xf32>, vector<8x3xf32> -> vector<8x3xf32>
    %73 = vector.broadcast %71 : vector<1x3xf32> to vector<8x3xf32>
    %74 = arith.addf %72, %73 : vector<8x3xf32>
    %c0_37 = arith.constant 0 : index
    %c0_38 = arith.constant 0 : index
    %75 = vector.load %arg5[%c0_37, %c0_38] : memref<8x3xf32, #tpu.memory_space<vmem>>, vector<8x3xf32>
    tpu.vector_store %arg5[%c0_37, %c0_38], %74 {strides = array<i32>} : memref<8x3xf32, #tpu.memory_space<vmem>>, vector<8x3xf32>,
    return
  }
}

</mosaic_0001>

<llo_original>
// kernel: net_forward.1
$region0: #{net_forward.1}
  #allocation0 [shape = 'u32[]', space=smem, size = 0x4, offset = 0x4, fixed_abs, tag = 'smem constant byte address 0x4 - core index']
  #allocation1 [shape = 'u32[144,128]{1,0:T(1,128)}', space=vmem, size = 0x12000, scoped, tag = 'internal scratch']
  %s0 = inlined_call_operand.vmem [shape: s32[80,2], index: 0, kind: input, shape index: {}]
  %s1 = inlined_call_operand.vmem [shape: f32[1,80], index: 1, kind: input, shape index: {}]
  %s2 = inlined_call_operand.vmem [shape: f32[8,12], index: 2, kind: input, shape index: {}]
  %s3 = inlined_call_operand.hbm [shape: f32[224,128], index: 3, kind: input, shape index: {}]
  %s4 = inlined_call_operand.vmem [shape: f32[8,128], index: 4, kind: input, shape index: {}]
  %s5 = inlined_call_operand.vmem [shape: f32[8,3], index: 5, kind: output, shape index: {}]
  %s6 = sld [smem:[#allocation0]]
  $region34: #{net_forward.1} parent=0
    _
  %s8 = ssub.s32 1, %s6
  %s9 = scalar_select 0, %s8, %s6
  $region1: #{net_forward.1} parent=0
    #allocation2 [shape = 'u8[114688]{0}', space=vmem, size = 0x1c000, scoped, tag = 'input window, operand 3, single buffered']
    #allocation3 [shape = 's32[1]{0}', space=sflag, size = 0x4, scoped, tag = 'scoped memory for net_forward.1']
    %10 = vsyncpa [#allocation3], 0
    // Predicated region
    $region2: #{net_forward.1} parent=1 // pred_check
      _
    $region3: #{net_forward.1} parent=1 // pred_check_branch
      %12 = sbr.rel (0) target = $region5
    $region4: #{net_forward.1} parent=1 // pred_region
      _
    $region5: #{net_forward.1} parent=1 // pred_fallthru
      _
    // Predicated region
    $region6: #{net_forward.1} parent=1 // pred_check
      _
    $region7: #{net_forward.1} parent=1 // pred_check_branch
      %14 = sbr.rel (0) target = $region9
    $region8: #{net_forward.1} parent=1 // pred_region
      _
    $region9: #{net_forward.1} parent=1 // pred_fallthru
      _
    // Predicated region
    $region10: #{net_forward.1} parent=1 // pred_check
      _
    $region11: #{net_forward.1} parent=1 // pred_check_branch
      %16 = sbr.rel (0) target = $region13
    $region12: #{net_forward.1} parent=1 // pred_region
      _
    $region13: #{net_forward.1} parent=1 // pred_fallthru
      _
    // Predicated region
    $region14: #{net_forward.1} parent=1 // pred_check
      _
    $region15: #{net_forward.1} parent=1 // pred_check_branch
      %18 = sbr.rel (0) target = $region17
    $region16: #{net_forward.1} parent=1 // pred_region
      %s20 = ssub.s32 3584, 3584
      %21 = vsyncadd [#allocation3], %s20
      %s22 = sshll.u32 [#allocation2], 4
      %s23 = int_to_ptr.vmem [resolvable:$true] %s22
      %28 = dma.hbm_to_vmem [thread:$0]  %s3, 3584, %s23, [#allocation3], 128, 128, 8
    $region17: #{net_forward.1} parent=1 // pred_fallthru
      _
    // Predicated region
    $region18: #{net_forward.1} parent=1 // pred_check
      _
    $region19: #{net_forward.1} parent=1 // pred_check_branch
      %30 = sbr.rel (0) target = $region21
    $region20: #{net_forward.1} parent=1 // pred_region
      _
    $region21: #{net_forward.1} parent=1 // pred_fallthru
      _
    // Predicated region
    $region22: #{net_forward.1} parent=1 // pred_check
      _
    $region23: #{net_forward.1} parent=1 // pred_check_branch
      %32 = sbr.rel (0) target = $region25
    $region24: #{net_forward.1} parent=1 // pred_region
      %33 = dma.done [#allocation3], 3584
    $region25: #{net_forward.1} parent=1 // pred_fallthru
      _
    %v34 = vld [vmem:[%s0] sm:$0xff]
    %v35 = vld [vmem:[%s0 + $0x8] sm:$0xff]
    %v36 = vld [vmem:[%s0 + $0x10] sm:$0xff]
    %v37 = vld [vmem:[%s0 + $0x18] sm:$0xff]
    %v38 = vld [vmem:[%s0 + $0x20] sm:$0xff]
    %v39 = vld [vmem:[%s0 + $0x28] sm:$0xff]
    %v40 = vld [vmem:[%s0 + $0x30] sm:$0xff]
    %v41 = vld [vmem:[%s0 + $0x38] sm:$0xff]
    %v42 = vld [vmem:[%s0 + $0x40] sm:$0xff]
    %v43 = vld [vmem:[%s0 + $0x48] sm:$0xff]
    %v44 = vcvt.s32.f32 %v34
    %v45 = vcvt.s32.f32 %v35
    %v46 = vcvt.s32.f32 %v36
    %v47 = vcvt.s32.f32 %v37
    %v48 = vcvt.s32.f32 %v38
    %v49 = vcvt.s32.f32 %v39
    %v50 = vcvt.s32.f32 %v40
    %v51 = vcvt.s32.f32 %v41
    %v52 = vcvt.s32.f32 %v42
    %v53 = vcvt.s32.f32 %v43
    %v54 = vlaneseq
    %v55 = vand.u32 %v54, 127
    %56 = vset.pattern.permute.xlu0 0
    %57 = vperm.xlu0 %56, %v34
    %v58 = vpop.permute.xlu0 %57
    %59 = vset.pattern.permute.xlu0 0
    %60 = vperm.xlu0 %59, %v35
    %v61 = vpop.permute.xlu0 %60
    %62 = vset.pattern.permute.xlu0 0
    %63 = vperm.xlu0 %62, %v36
    %v64 = vpop.permute.xlu0 %63
    %65 = vset.pattern.permute.xlu0 0
    %66 = vperm.xlu0 %65, %v37
    %v67 = vpop.permute.xlu0 %66
    %68 = vset.pattern.permute.xlu0 0
    %69 = vperm.xlu0 %68, %v38
    %v70 = vpop.permute.xlu0 %69
    %71 = vset.pattern.permute.xlu0 0
    %72 = vperm.xlu0 %71, %v39
    %v73 = vpop.permute.xlu0 %72
    %74 = vset.pattern.permute.xlu0 0
    %75 = vperm.xlu0 %74, %v40
    %v76 = vpop.permute.xlu0 %75
    %77 = vset.pattern.permute.xlu0 0
    %78 = vperm.xlu0 %77, %v41
    %v79 = vpop.permute.xlu0 %78
    %80 = vset.pattern.permute.xlu0 0
    %81 = vperm.xlu0 %80, %v42
    %v82 = vpop.permute.xlu0 %81
    %83 = vset.pattern.permute.xlu0 0
    %84 = vperm.xlu0 %83, %v43
    %v85 = vpop.permute.xlu0 %84
    %vm86 = vcmp.eq.s32.totalorder %v58, %v55
    %vm87 = vcmp.eq.s32.totalorder %v61, %v55
    %vm88 = vcmp.eq.s32.totalorder %v64, %v55
    %vm89 = vcmp.eq.s32.totalorder %v67, %v55
    %vm90 = vcmp.eq.s32.totalorder %v70, %v55
    %vm91 = vcmp.eq.s32.totalorder %v73, %v55
    %vm92 = vcmp.eq.s32.totalorder %v76, %v55
    %vm93 = vcmp.eq.s32.totalorder %v79, %v55
    %vm94 = vcmp.eq.s32.totalorder %v82, %v55
    %vm95 = vcmp.eq.s32.totalorder %v85, %v55
    %v96 = vsel %vm86, 1, 0
    %v97 = vsel %vm87, 1, 0
    %v98 = vsel %vm88, 1, 0
    %v99 = vsel %vm89, 1, 0
    %v100 = vsel %vm90, 1, 0
    %v101 = vsel %vm91, 1, 0
    %v102 = vsel %vm92, 1, 0
    %v103 = vsel %vm93, 1, 0
    %v104 = vsel %vm94, 1, 0
    %v105 = vsel %vm95, 1, 0
    %v106 = vcvt.s32.f32 %v96
    %v107 = vcvt.s32.f32 %v97
    %v108 = vcvt.s32.f32 %v98
    %v109 = vcvt.s32.f32 %v99
    %v110 = vcvt.s32.f32 %v100
    %v111 = vcvt.s32.f32 %v101
    %v112 = vcvt.s32.f32 %v102
    %v113 = vcvt.s32.f32 %v103
    %v114 = vcvt.s32.f32 %v104
    %v115 = vcvt.s32.f32 %v105
    %v116 = vld [vmem:[#allocation2] sm:$0xff]
    %v117 = vld [vmem:[#allocation2 + $0x8] sm:$0xff]
    %v118 = vld [vmem:[#allocation2 + $0x10] sm:$0xff]
    %v119 = vld [vmem:[#allocation2 + $0x18] sm:$0xff]
    %v120 = vld [vmem:[#allocation2 + $0x20] sm:$0xff]
    %v121 = vld [vmem:[#allocation2 + $0x28] sm:$0xff]
    %v122 = vld [vmem:[#allocation2 + $0x30] sm:$0x3]
    %v123 = vld [vmem:[%s4 + $0x5] sm:$0x1]
    %v124 = vld [vmem:[%s4 + $0x6] sm:$0x1]
    %v125 = vlaneseq
    %v126 = vshrl.u32 %v125, 7
    %v127 = vsub.s32 0, %v126
    %v128 = vrot.slane %v123, %v127
    %vm129 = vcmask 408576
    %v131 = vsel %vm129, %v106, 0
    %v134 = vsel %vm129, %v107, 0
    %v137 = vsel %vm129, %v108, 0
    %v140 = vsel %vm129, %v109, 0
    %v143 = vsel %vm129, %v110, 0
    %v146 = vsel %vm129, %v111, 0
    %v149 = vsel %vm129, %v112, 0
    %v152 = vsel %vm129, %v113, 0
    %v155 = vsel %vm129, %v114, 0
    %v158 = vsel %vm129, %v115, 0
    %vm160 = vcmask 1041408
    %v162 = vsel %vm160, %v122, 0
    %164 = vmatprep.subr.mxu0 0.0
    %165 = vmatpush1.msra.mxu0 0.0
    %166 = vmatprep.subr.mxu0 0.0
    %167 = vmatpush1.msra.mxu0 0.0
    %168 = vmatprep.subr.mxu0 0.0
    %169 = vmatpush1.msra.mxu0 0.0
    %170 = vmatprep.subr.mxu0 0.0
    %171 = vmatpush1.msra.mxu0 0.0
    %172 = vmatprep.subr.mxu0 0.0
    %173 = vmatpush1.msra.mxu0 0.0
    %174 = vmatprep.subr.mxu0 0.0
    %175 = vmatpush1.msra.mxu0 0.0
    %176 = vmatprep.subr.mxu0 0.0
    %177 = vmatpush1.msra.mxu0 0.0
    %178 = vmatprep.subr.mxu0 0.0
    %179 = vmatpush1.msra.mxu0 0.0
    %180 = vmatprep.subr.mxu0 0.0
    %181 = vmatpush1.msra.mxu0 0.0
    %182 = vmatprep.subr.mxu0 0.0
    %183 = vmatpush1.msra.mxu0 %v162
    %184 = vmatprep.subr.mxu0 0.0
    %185 = vmatpush1.msra.mxu0 %v121
    %186 = vmatprep.subr.mxu0 0.0
    %187 = vmatpush1.msra.mxu0 %v120
    %188 = vmatprep.subr.mxu0 0.0
    %189 = vmatpush1.msra.mxu0 %v119
    %190 = vmatprep.subr.mxu0 0.0
    %191 = vmatpush1.msra.mxu0 %v118
    %192 = vmatprep.subr.mxu0 0.0
    %193 = vmatpush1.msra.mxu0 %v117
    %194 = vmatprep.subr.mxu0 0.0
    %195 = vmatpush1.msra.mxu0 %v116
    %196 = vmatprep.subr.mxu0 0.0
    %197 = vmatpush2.msra.mxu0 0.0
    %198 = vmatprep.subr.mxu0 0.0
    %199 = vmatpush2.msra.mxu0 0.0
    %200 = vmatprep.subr.mxu0 0.0
    %201 = vmatpush2.msra.mxu0 0.0
    %202 = vmatprep.subr.mxu0 0.0
    %203 = vmatpush2.msra.mxu0 0.0
    %204 = vmatprep.subr.mxu0 0.0
    %205 = vmatpush2.msra.mxu0 0.0
    %206 = vmatprep.subr.mxu0 0.0
    %207 = vmatpush2.msra.mxu0 0.0
    %208 = vmatprep.subr.mxu0 0.0
    %209 = vmatpush2.msra.mxu0 0.0
    %210 = vmatprep.subr.mxu0 0.0
    %211 = vmatpush2.msra.mxu0 0.0
    %212 = vmatprep.subr.mxu0 0.0
    %213 = vmatpush2.msra.mxu0 0.0
    %214 = vmatprep.subr.mxu0 0.0
    %215 = vmatpush2.msra.mxu0 0.0
    %216 = vmatprep.subr.mxu0 0.0
    %217 = vmatpush2.msra.mxu0 0.0
    %218 = vmatprep.subr.mxu0 0.0
    %219 = vmatpush2.msra.mxu0 0.0
    %220 = vmatprep.subr.mxu0 0.0
    %221 = vmatpush2.msra.mxu0 0.0
    %222 = vmatprep.subr.mxu0 0.0
    %223 = vmatpush2.msra.mxu0 0.0
    %224 = vmatprep.subr.mxu0 0.0
    %225 = vmatpush2.msra.mxu0 0.0
    %226 = vmatprep.subr.mxu0 0.0
    %227 = vmatpush2.msra.mxu0 0.0
    %228 = vmatprep.mubr.f32.mxu0 0.0
    %229 = vmatmul.mubr.f32.gmra.mxu0 %v131
    %v230 = vpop.f32.mrf.mxu0
    %v231 = vadd.f32 %v128, %v230
    %v232 = vpop.f32.mrf.mxu0
    %233 = vmatprep.mubr.f32.mxu0 0.0
    %234 = vmatmul.mubr.f32.gmra.mxu0 %v134
    %v235 = vpop.f32.mrf.mxu0
    %v236 = vadd.f32 %v128, %v235
    %v237 = vpop.f32.mrf.mxu0
    %238 = vmatprep.mubr.f32.mxu0 0.0
    %239 = vmatmul.mubr.f32.gmra.mxu0 %v137
    %v240 = vpop.f32.mrf.mxu0
    %v241 = vadd.f32 %v128, %v240
    %v242 = vpop.f32.mrf.mxu0
    %243 = vmatprep.mubr.f32.mxu0 0.0
    %244 = vmatmul.mubr.f32.gmra.mxu0 %v140
    %v245 = vpop.f32.mrf.mxu0
    %v246 = vadd.f32 %v128, %v245
    %v247 = vpop.f32.mrf.mxu0
    %248 = vmatprep.mubr.f32.mxu0 0.0
    %249 = vmatmul.mubr.f32.gmra.mxu0 %v143
    %v250 = vpop.f32.mrf.mxu0
    %v251 = vadd.f32 %v128, %v250
    %v252 = vpop.f32.mrf.mxu0
    %253 = vmatprep.mubr.f32.mxu0 0.0
    %254 = vmatmul.mubr.f32.gmra.mxu0 %v146
    %v255 = vpop.f32.mrf.mxu0
    %v256 = vadd.f32 %v128, %v255
    %v257 = vpop.f32.mrf.mxu0
    %258 = vmatprep.mubr.f32.mxu0 0.0
    %259 = vmatmul.mubr.f32.gmra.mxu0 %v149
    %v260 = vpop.f32.mrf.mxu0
    %v261 = vadd.f32 %v128, %v260
    %v262 = vpop.f32.mrf.mxu0
    %263 = vmatprep.mubr.f32.mxu0 0.0
    %264 = vmatmul.mubr.f32.gmra.mxu0 %v152
    %v265 = vpop.f32.mrf.mxu0
    %v266 = vadd.f32 %v128, %v265
    %v267 = vpop.f32.mrf.mxu0
    %268 = vmatprep.mubr.f32.mxu0 0.0
    %269 = vmatmul.mubr.f32.gmra.mxu0 %v155
    %v270 = vpop.f32.mrf.mxu0
    %v271 = vadd.f32 %v128, %v270
    %v272 = vpop.f32.mrf.mxu0
    %273 = vmatprep.mubr.f32.mxu0 0.0
    %274 = vmatmul.mubr.f32.gmra.mxu0 %v158
    %v275 = vpop.f32.mrf.mxu0
    %v276 = vadd.f32 %v128, %v275
    %v277 = vpop.f32.mrf.mxu0
    %278 = vdwg.mxu0
    %280 = vset.pattern.permute.xlu0 1
    %281 = vperm.xlu0 %280, %v44
    %v282 = vpop.permute.xlu0 %281
    %285 = vset.pattern.permute.xlu0 1
    %286 = vperm.xlu0 %285, %v45
    %v287 = vpop.permute.xlu0 %286
    %290 = vset.pattern.permute.xlu0 1
    %291 = vperm.xlu0 %290, %v46
    %v292 = vpop.permute.xlu0 %291
    %295 = vset.pattern.permute.xlu0 1
    %296 = vperm.xlu0 %295, %v47
    %v297 = vpop.permute.xlu0 %296
    %300 = vset.pattern.permute.xlu0 1
    %301 = vperm.xlu0 %300, %v48
    %v302 = vpop.permute.xlu0 %301
    %305 = vset.pattern.permute.xlu0 1
    %306 = vperm.xlu0 %305, %v49
    %v307 = vpop.permute.xlu0 %306
    %310 = vset.pattern.permute.xlu0 1
    %311 = vperm.xlu0 %310, %v50
    %v312 = vpop.permute.xlu0 %311
    %315 = vset.pattern.permute.xlu0 1
    %316 = vperm.xlu0 %315, %v51
    %v317 = vpop.permute.xlu0 %316
    %320 = vset.pattern.permute.xlu0 1
    %321 = vperm.xlu0 %320, %v52
    %v322 = vpop.permute.xlu0 %321
    %325 = vset.pattern.permute.xlu0 1
    %326 = vperm.xlu0 %325, %v53
    %v327 = vpop.permute.xlu0 %326
    %v329 = vlaneseq
    %v330 = vshrl.u32 %v329, 7
    %v331 = vsub.s32 0, %v330
    %v332 = vrot.slane %v124, %v331
    %v333 = vmul.f32 %v282, %v332
    %v334 = vmul.f32 %v287, %v332
    %v335 = vmul.f32 %v292, %v332
    %v336 = vmul.f32 %v297, %v332
    %v337 = vmul.f32 %v302, %v332
    %v338 = vmul.f32 %v307, %v332
    %v339 = vmul.f32 %v312, %v332
    %v340 = vmul.f32 %v317, %v332
    %v341 = vmul.f32 %v322, %v332
    %v342 = vmul.f32 %v327, %v332
    %v343 = vadd.f32 %v231, %v333
    %v344 = vadd.f32 %v236, %v334
    %v345 = vadd.f32 %v241, %v335
    %v346 = vadd.f32 %v246, %v336
    %v347 = vadd.f32 %v251, %v337
    %v348 = vadd.f32 %v256, %v338
    %v349 = vadd.f32 %v261, %v339
    %v350 = vadd.f32 %v266, %v340
    %v351 = vadd.f32 %v271, %v341
    %v352 = vadd.f32 %v276, %v342
    %v353 = vld [vmem:[%s1] sm:$0x1]
    %v354 = vlaneseq
    %v355 = vshrl.u32 %v354, 7
    %v356 = vmul.u32 %v355, 10
    %vm357 = vcmp.ge.s32.totalorder %v55, %v356
    %v358 = vadd.s32 %v356, 10
    %vm359 = vcmp.lt.s32.totalorder %v55, %v358
    %vm360 = vmand %vm357, %vm359
    %v362 = vlaneseq
    %v363 = vshrl.u32 %v362, 7
    %v364 = vsub.s32 0, %v363
    %v365 = vrot.slane %v353, %v364
    %v367 = vsel %vm360, %v365, 0.0
    %vm368 = vcmask 654336
    %v370 = vsel %vm368, %v367, 0
    %372 = vmatprep.subr.mxu0 0.0
    %373 = vmatpush1.msra.mxu0 0.0
    %374 = vmatprep.subr.mxu0 0.0
    %375 = vmatpush1.msra.mxu0 0.0
    %376 = vmatprep.subr.mxu0 0.0
    %377 = vmatpush1.msra.mxu0 0.0
    %378 = vmatprep.subr.mxu0 0.0
    %379 = vmatpush1.msra.mxu0 0.0
    %380 = vmatprep.subr.mxu0 0.0
    %381 = vmatpush1.msra.mxu0 0.0
    %382 = vmatprep.subr.mxu0 0.0
    %383 = vmatpush1.msra.mxu0 0.0
    %384 = vmatprep.subr.mxu0 0.0
    %385 = vmatpush1.msra.mxu0 %v352
    %386 = vmatprep.subr.mxu0 0.0
    %387 = vmatpush1.msra.mxu0 %v351
    %388 = vmatprep.subr.mxu0 0.0
    %389 = vmatpush1.msra.mxu0 %v350
    %390 = vmatprep.subr.mxu0 0.0
    %391 = vmatpush1.msra.mxu0 %v349
    %392 = vmatprep.subr.mxu0 0.0
    %393 = vmatpush1.msra.mxu0 %v348
    %394 = vmatprep.subr.mxu0 0.0
    %395 = vmatpush1.msra.mxu0 %v347
    %396 = vmatprep.subr.mxu0 0.0
    %397 = vmatpush1.msra.mxu0 %v346
    %398 = vmatprep.subr.mxu0 0.0
    %399 = vmatpush1.msra.mxu0 %v345
    %400 = vmatprep.subr.mxu0 0.0
    %401 = vmatpush1.msra.mxu0 %v344
    %402 = vmatprep.subr.mxu0 0.0
    %403 = vmatpush1.msra.mxu0 %v343
    %404 = vmatprep.subr.mxu0 0.0
    %405 = vmatpush2.msra.mxu0 0.0
    %406 = vmatprep.subr.mxu0 0.0
    %407 = vmatpush2.msra.mxu0 0.0
    %408 = vmatprep.subr.mxu0 0.0
    %409 = vmatpush2.msra.mxu0 0.0
    %410 = vmatprep.subr.mxu0 0.0
    %411 = vmatpush2.msra.mxu0 0.0
    %412 = vmatprep.subr.mxu0 0.0
    %413 = vmatpush2.msra.mxu0 0.0
    %414 = vmatprep.subr.mxu0 0.0
    %415 = vmatpush2.msra.mxu0 0.0
    %416 = vmatprep.subr.mxu0 0.0
    %417 = vmatpush2.msra.mxu0 0.0
    %418 = vmatprep.subr.mxu0 0.0
    %419 = vmatpush2.msra.mxu0 0.0
    %420 = vmatprep.subr.mxu0 0.0
    %421 = vmatpush2.msra.mxu0 0.0
    %422 = vmatprep.subr.mxu0 0.0
    %423 = vmatpush2.msra.mxu0 0.0
    %424 = vmatprep.subr.mxu0 0.0
    %425 = vmatpush2.msra.mxu0 0.0
    %426 = vmatprep.subr.mxu0 0.0
    %427 = vmatpush2.msra.mxu0 0.0
    %428 = vmatprep.subr.mxu0 0.0
    %429 = vmatpush2.msra.mxu0 0.0
    %430 = vmatprep.subr.mxu0 0.0
    %431 = vmatpush2.msra.mxu0 0.0
    %432 = vmatprep.subr.mxu0 0.0
    %433 = vmatpush2.msra.mxu0 0.0
    %434 = vmatprep.subr.mxu0 0.0
    %435 = vmatpush2.msra.mxu0 0.0
    %436 = vmatprep.mubr.f32.mxu0 0.0
    %437 = vmatmul.mubr.f32.gmra.mxu0 %v370
    %v438 = vpop.f32.mrf.mxu0
    %v439 = vadd.f32 0.0, %v438
    %v440 = vpop.f32.mrf.mxu0
    %441 = vdwg.mxu0
    %v442 = vsel %vm368, %v367, 0.0
    %443 = vadd.xlane.f32.xlu0 %v442
    %v444 = vpop.xlane.xlu0 %443
    %v445 = vmax.f32 %v444, 1.0
    %v446 = vrcp.pop %v445
    %v447 = vmul.f32 %v439, %v446
    %v448 = vld [vmem:[#allocation2 + $0x38] sm:$0xff]
    %v449 = vld [vmem:[#allocation2 + $0x40] sm:$0xff]
    %v450 = vld [vmem:[#allocation2 + $0x48] sm:$0xff]
    %v451 = vld [vmem:[#allocation2 + $0x50] sm:$0xff]
    %v452 = vld [vmem:[%s4] sm:$0x1]
    %v453 = vlaneseq
    %v454 = vshrl.u32 %v453, 7
    %v455 = vsub.s32 0, %v454
    %v456 = vrot.slane %v452, %v455
    %vm457 = vcmask 261120
    %v459 = vsel %vm457, %v447, 0
    %461 = vmatprep.subr.mxu0 0.0
    %462 = vmatpush1.msra.mxu0 0.0
    %463 = vmatprep.subr.mxu0 0.0
    %464 = vmatpush1.msra.mxu0 0.0
    %465 = vmatprep.subr.mxu0 0.0
    %466 = vmatpush1.msra.mxu0 0.0
    %467 = vmatprep.subr.mxu0 0.0
    %468 = vmatpush1.msra.mxu0 0.0
    %469 = vmatprep.subr.mxu0 0.0
    %470 = vmatpush1.msra.mxu0 0.0
    %471 = vmatprep.subr.mxu0 0.0
    %472 = vmatpush1.msra.mxu0 0.0
    %473 = vmatprep.subr.mxu0 0.0
    %474 = vmatpush1.msra.mxu0 0.0
    %475 = vmatprep.subr.mxu0 0.0
    %476 = vmatpush1.msra.mxu0 0.0
    %477 = vmatprep.subr.mxu0 0.0
    %478 = vmatpush1.msra.mxu0 0.0
    %479 = vmatprep.subr.mxu0 0.0
    %480 = vmatpush1.msra.mxu0 0.0
    %481 = vmatprep.subr.mxu0 0.0
    %482 = vmatpush1.msra.mxu0 0.0
    %483 = vmatprep.subr.mxu0 0.0
    %484 = vmatpush1.msra.mxu0 0.0
    %485 = vmatprep.subr.mxu0 0.0
    %486 = vmatpush1.msra.mxu0 %v451
    %487 = vmatprep.subr.mxu0 0.0
    %488 = vmatpush1.msra.mxu0 %v450
    %489 = vmatprep.subr.mxu0 0.0
    %490 = vmatpush1.msra.mxu0 %v449
    %491 = vmatprep.subr.mxu0 0.0
    %492 = vmatpush1.msra.mxu0 %v448
    %493 = vmatprep.subr.mxu0 0.0
    %494 = vmatpush2.msra.mxu0 0.0
    %495 = vmatprep.subr.mxu0 0.0
    %496 = vmatpush2.msra.mxu0 0.0
    %497 = vmatprep.subr.mxu0 0.0
    %498 = vmatpush2.msra.mxu0 0.0
    %499 = vmatprep.subr.mxu0 0.0
    %500 = vmatpush2.msra.mxu0 0.0
    %501 = vmatprep.subr.mxu0 0.0
    %502 = vmatpush2.msra.mxu0 0.0
    %503 = vmatprep.subr.mxu0 0.0
    %504 = vmatpush2.msra.mxu0 0.0
    %505 = vmatprep.subr.mxu0 0.0
    %506 = vmatpush2.msra.mxu0 0.0
    %507 = vmatprep.subr.mxu0 0.0
    %508 = vmatpush2.msra.mxu0 0.0
    %509 = vmatprep.subr.mxu0 0.0
    %510 = vmatpush2.msra.mxu0 0.0
    %511 = vmatprep.subr.mxu0 0.0
    %512 = vmatpush2.msra.mxu0 0.0
    %513 = vmatprep.subr.mxu0 0.0
    %514 = vmatpush2.msra.mxu0 0.0
    %515 = vmatprep.subr.mxu0 0.0
    %516 = vmatpush2.msra.mxu0 0.0
    %517 = vmatprep.subr.mxu0 0.0
    %518 = vmatpush2.msra.mxu0 0.0
    %519 = vmatprep.subr.mxu0 0.0
    %520 = vmatpush2.msra.mxu0 0.0
    %521 = vmatprep.subr.mxu0 0.0
    %522 = vmatpush2.msra.mxu0 0.0
    %523 = vmatprep.subr.mxu0 0.0
    %524 = vmatpush2.msra.mxu0 0.0
    %525 = vmatprep.mubr.f32.mxu0 0.0
    %526 = vmatmul.mubr.f32.gmra.mxu0 %v459
    %v527 = vpop.f32.mrf.mxu0
    %v528 = vadd.f32 %v456, %v527
    %v529 = vpop.f32.mrf.mxu0
    %530 = vdwg.mxu0
    %v531 = vtanh.pop %v528
    %v532 = vld [vmem:[#allocation2 + $0x78] sm:$0xff]
    %v533 = vld [vmem:[#allocation2 + $0x80] sm:$0xf]
    %v534 = vld [vmem:[%s4 + $0x2] sm:$0x1]
    %v535 = vld [vmem:[%s2] sm:$0xff]
    %v536 = vlaneseq
    %v537 = vshrl.u32 %v536, 7
    %v538 = vsub.s32 0, %v537
    %v539 = vrot.slane %v534, %v538
    %vm540 = vcmask 97280
    %v542 = vsel %vm540, %v535, 0
    %vm544 = vcmask 1043456
    %v546 = vsel %vm544, %v533, 0
    %548 = vmatprep.subr.mxu0 0.0
    %549 = vmatpush1.msra.mxu0 0.0
    %550 = vmatprep.subr.mxu0 0.0
    %551 = vmatpush1.msra.mxu0 0.0
    %552 = vmatprep.subr.mxu0 0.0
    %553 = vmatpush1.msra.mxu0 0.0
    %554 = vmatprep.subr.mxu0 0.0
    %555 = vmatpush1.msra.mxu0 0.0
    %556 = vmatprep.subr.mxu0 0.0
    %557 = vmatpush1.msra.mxu0 0.0
    %558 = vmatprep.subr.mxu0 0.0
    %559 = vmatpush1.msra.mxu0 0.0
    %560 = vmatprep.subr.mxu0 0.0
    %561 = vmatpush1.msra.mxu0 0.0
    %562 = vmatprep.subr.mxu0 0.0
    %563 = vmatpush1.msra.mxu0 0.0
    %564 = vmatprep.subr.mxu0 0.0
    %565 = vmatpush1.msra.mxu0 0.0
    %566 = vmatprep.subr.mxu0 0.0
    %567 = vmatpush1.msra.mxu0 0.0
    %568 = vmatprep.subr.mxu0 0.0
    %569 = vmatpush1.msra.mxu0 0.0
    %570 = vmatprep.subr.mxu0 0.0
    %571 = vmatpush1.msra.mxu0 0.0
    %572 = vmatprep.subr.mxu0 0.0
    %573 = vmatpush1.msra.mxu0 0.0
    %574 = vmatprep.subr.mxu0 0.0
    %575 = vmatpush1.msra.mxu0 0.0
    %576 = vmatprep.subr.mxu0 0.0
    %577 = vmatpush1.msra.mxu0 %v546
    %578 = vmatprep.subr.mxu0 0.0
    %579 = vmatpush1.msra.mxu0 %v532
    %580 = vmatprep.subr.mxu0 0.0
    %581 = vmatpush2.msra.mxu0 0.0
    %582 = vmatprep.subr.mxu0 0.0
    %583 = vmatpush2.msra.mxu0 0.0
    %584 = vmatprep.subr.mxu0 0.0
    %585 = vmatpush2.msra.mxu0 0.0
    %586 = vmatprep.subr.mxu0 0.0
    %587 = vmatpush2.msra.mxu0 0.0
    %588 = vmatprep.subr.mxu0 0.0
    %589 = vmatpush2.msra.mxu0 0.0
    %590 = vmatprep.subr.mxu0 0.0
    %591 = vmatpush2.msra.mxu0 0.0
    %592 = vmatprep.subr.mxu0 0.0
    %593 = vmatpush2.msra.mxu0 0.0
    %594 = vmatprep.subr.mxu0 0.0
    %595 = vmatpush2.msra.mxu0 0.0
    %596 = vmatprep.subr.mxu0 0.0
    %597 = vmatpush2.msra.mxu0 0.0
    %598 = vmatprep.subr.mxu0 0.0
    %599 = vmatpush2.msra.mxu0 0.0
    %600 = vmatprep.subr.mxu0 0.0
    %601 = vmatpush2.msra.mxu0 0.0
    %602 = vmatprep.subr.mxu0 0.0
    %603 = vmatpush2.msra.mxu0 0.0
    %604 = vmatprep.subr.mxu0 0.0
    %605 = vmatpush2.msra.mxu0 0.0
    %606 = vmatprep.subr.mxu0 0.0
    %607 = vmatpush2.msra.mxu0 0.0
    %608 = vmatprep.subr.mxu0 0.0
    %609 = vmatpush2.msra.mxu0 0.0
    %610 = vmatprep.subr.mxu0 0.0
    %611 = vmatpush2.msra.mxu0 0.0
    %612 = vmatprep.mubr.f32.mxu0 0.0
    %613 = vmatmul.mubr.f32.gmra.mxu0 %v542
    %v614 = vpop.f32.mrf.mxu0
    %v615 = vadd.f32 %v539, %v614
    %v616 = vpop.f32.mrf.mxu0
    %617 = vdwg.mxu0
    %v618 = vmax.f32 %v615, 0.0
    %v619 = vld [vmem:[#allocation2 + $0x58] sm:$0xff]
    %v620 = vld [vmem:[#allocation2 + $0x60] sm:$0xff]
    %v621 = vld [vmem:[#allocation2 + $0x68] sm:$0xff]
    %v622 = vld [vmem:[#allocation2 + $0x70] sm:$0xff]
    %v623 = vld [vmem:[%s4 + $0x1] sm:$0x1]
    %v624 = vlaneseq
    %v625 = vshrl.u32 %v624, 7
    %v626 = vsub.s32 0, %v625
    %v627 = vrot.slane %v623, %v626
    %v629 = vsel %vm457, %v531, 0
    %631 = vmatprep.subr.mxu0 0.0
    %632 = vmatpush1.msra.mxu0 0.0
    %633 = vmatprep.subr.mxu0 0.0
    %634 = vmatpush1.msra.mxu0 0.0
    %635 = vmatprep.subr.mxu0 0.0
    %636 = vmatpush1.msra.mxu0 0.0
    %637 = vmatprep.subr.mxu0 0.0
    %638 = vmatpush1.msra.mxu0 0.0
    %639 = vmatprep.subr.mxu0 0.0
    %640 = vmatpush1.msra.mxu0 0.0
    %641 = vmatprep.subr.mxu0 0.0
    %642 = vmatpush1.msra.mxu0 0.0
    %643 = vmatprep.subr.mxu0 0.0
    %644 = vmatpush1.msra.mxu0 0.0
    %645 = vmatprep.subr.mxu0 0.0
    %646 = vmatpush1.msra.mxu0 0.0
    %647 = vmatprep.subr.mxu0 0.0
    %648 = vmatpush1.msra.mxu0 0.0
    %649 = vmatprep.subr.mxu0 0.0
    %650 = vmatpush1.msra.mxu0 0.0
    %651 = vmatprep.subr.mxu0 0.0
    %652 = vmatpush1.msra.mxu0 0.0
    %653 = vmatprep.subr.mxu0 0.0
    %654 = vmatpush1.msra.mxu0 0.0
    %655 = vmatprep.subr.mxu0 0.0
    %656 = vmatpush1.msra.mxu0 %v622
    %657 = vmatprep.subr.mxu0 0.0
    %658 = vmatpush1.msra.mxu0 %v621
    %659 = vmatprep.subr.mxu0 0.0
    %660 = vmatpush1.msra.mxu0 %v620
    %661 = vmatprep.subr.mxu0 0.0
    %662 = vmatpush1.msra.mxu0 %v619
    %663 = vmatprep.subr.mxu0 0.0
    %664 = vmatpush2.msra.mxu0 0.0
    %665 = vmatprep.subr.mxu0 0.0
    %666 = vmatpush2.msra.mxu0 0.0
    %667 = vmatprep.subr.mxu0 0.0
    %668 = vmatpush2.msra.mxu0 0.0
    %669 = vmatprep.subr.mxu0 0.0
    %670 = vmatpush2.msra.mxu0 0.0
    %671 = vmatprep.subr.mxu0 0.0
    %672 = vmatpush2.msra.mxu0 0.0
    %673 = vmatprep.subr.mxu0 0.0
    %674 = vmatpush2.msra.mxu0 0.0
    %675 = vmatprep.subr.mxu0 0.0
    %676 = vmatpush2.msra.mxu0 0.0
    %677 = vmatprep.subr.mxu0 0.0
    %678 = vmatpush2.msra.mxu0 0.0
    %679 = vmatprep.subr.mxu0 0.0
    %680 = vmatpush2.msra.mxu0 0.0
    %681 = vmatprep.subr.mxu0 0.0
    %682 = vmatpush2.msra.mxu0 0.0
    %683 = vmatprep.subr.mxu0 0.0
    %684 = vmatpush2.msra.mxu0 0.0
    %685 = vmatprep.subr.mxu0 0.0
    %686 = vmatpush2.msra.mxu0 0.0
    %687 = vmatprep.subr.mxu0 0.0
    %688 = vmatpush2.msra.mxu0 0.0
    %689 = vmatprep.subr.mxu0 0.0
    %690 = vmatpush2.msra.mxu0 0.0
    %691 = vmatprep.subr.mxu0 0.0
    %692 = vmatpush2.msra.mxu0 0.0
    %693 = vmatprep.subr.mxu0 0.0
    %694 = vmatpush2.msra.mxu0 0.0
    %695 = vmatprep.mubr.f32.mxu0 0.0
    %696 = vmatmul.mubr.f32.gmra.mxu0 %v629
    %v697 = vpop.f32.mrf.mxu0
    %v698 = vadd.f32 %v627, %v697
    %v699 = vpop.f32.mrf.mxu0
    %700 = vdwg.mxu0
    %v701 = vmax.f32 %v698, 0.0
    %v702 = vld [vmem:[#allocation2 + $0x88] sm:$0xff]
    %v703 = vld [vmem:[#allocation2 + $0x90] sm:$0xff]
    %v704 = vld [vmem:[#allocation2 + $0x98] sm:$0xff]
    %v705 = vld [vmem:[#allocation2 + $0xa0] sm:$0xff]
    %v706 = vld [vmem:[#allocation2 + $0xa8] sm:$0xff]
    %v707 = vld [vmem:[#allocation2 + $0xb0] sm:$0xff]
    %v708 = vld [vmem:[#allocation2 + $0xb8] sm:$0xff]
    %v709 = vld [vmem:[#allocation2 + $0xc0] sm:$0xff]
    %v710 = vld [vmem:[%s4 + $0x3] sm:$0x1]
    %vm711 = vcmask 130048
    %v713 = vsel %vm711, %v618, 0
    %715 = vmatprep.subr.mxu0 0.0
    %716 = vmatpush1.msra.mxu0 0.0
    %717 = vmatprep.subr.mxu0 0.0
    %718 = vmatpush1.msra.mxu0 0.0
    %719 = vmatprep.subr.mxu0 0.0
    %720 = vmatpush1.msra.mxu0 0.0
    %721 = vmatprep.subr.mxu0 0.0
    %722 = vmatpush1.msra.mxu0 0.0
    %723 = vmatprep.subr.mxu0 0.0
    %724 = vmatpush1.msra.mxu0 0.0
    %725 = vmatprep.subr.mxu0 0.0
    %726 = vmatpush1.msra.mxu0 0.0
    %727 = vmatprep.subr.mxu0 0.0
    %728 = vmatpush1.msra.mxu0 0.0
    %729 = vmatprep.subr.mxu0 0.0
    %730 = vmatpush1.msra.mxu0 0.0
    %731 = vmatprep.subr.mxu0 0.0
    %732 = vmatpush1.msra.mxu0 0.0
    %733 = vmatprep.subr.mxu0 0.0
    %734 = vmatpush1.msra.mxu0 0.0
    %735 = vmatprep.subr.mxu0 0.0
    %736 = vmatpush1.msra.mxu0 0.0
    %737 = vmatprep.subr.mxu0 0.0
    %738 = vmatpush1.msra.mxu0 0.0
    %739 = vmatprep.subr.mxu0 0.0
    %740 = vmatpush1.msra.mxu0 0.0
    %741 = vmatprep.subr.mxu0 0.0
    %742 = vmatpush1.msra.mxu0 0.0
    %743 = vmatprep.subr.mxu0 0.0
    %744 = vmatpush1.msra.mxu0 %v709
    %745 = vmatprep.subr.mxu0 0.0
    %746 = vmatpush1.msra.mxu0 %v708
    %747 = vmatprep.subr.mxu0 0.0
    %748 = vmatpush2.msra.mxu0 0.0
    %749 = vmatprep.subr.mxu0 0.0
    %750 = vmatpush2.msra.mxu0 0.0
    %751 = vmatprep.subr.mxu0 0.0
    %752 = vmatpush2.msra.mxu0 0.0
    %753 = vmatprep.subr.mxu0 0.0
    %754 = vmatpush2.msra.mxu0 0.0
    %755 = vmatprep.subr.mxu0 0.0
    %756 = vmatpush2.msra.mxu0 0.0
    %757 = vmatprep.subr.mxu0 0.0
    %758 = vmatpush2.msra.mxu0 0.0
    %759 = vmatprep.subr.mxu0 0.0
    %760 = vmatpush2.msra.mxu0 0.0
    %761 = vmatprep.subr.mxu0 0.0
    %762 = vmatpush2.msra.mxu0 0.0
    %763 = vmatprep.subr.mxu0 0.0
    %764 = vmatpush2.msra.mxu0 0.0
    %765 = vmatprep.subr.mxu0 0.0
    %766 = vmatpush2.msra.mxu0 0.0
    %767 = vmatprep.subr.mxu0 0.0
    %768 = vmatpush2.msra.mxu0 0.0
    %769 = vmatprep.subr.mxu0 0.0
    %770 = vmatpush2.msra.mxu0 0.0
    %771 = vmatprep.subr.mxu0 0.0
    %772 = vmatpush2.msra.mxu0 0.0
    %773 = vmatprep.subr.mxu0 0.0
    %774 = vmatpush2.msra.mxu0 0.0
    %775 = vmatprep.subr.mxu0 0.0
    %776 = vmatpush2.msra.mxu0 0.0
    %777 = vmatprep.subr.mxu0 0.0
    %778 = vmatpush2.msra.mxu0 0.0
    %779 = vmatprep.mubr.f32.mxu0 0.0
    %780 = vmatmul.mubr.f32.gmra.mxu0 %v713
    %v781 = vpop.f32.mrf.mxu0
    %v782 = vadd.f32 0.0, %v781
    %v783 = vpop.f32.mrf.mxu0
    %784 = vdwg.mxu0
    %vm785 = vcmask 392192
    %v787 = vsel %vm785, %v701, 0
    %789 = vmatprep.subr.mxu0 0.0
    %790 = vmatpush1.msra.mxu0 0.0
    %791 = vmatprep.subr.mxu0 0.0
    %792 = vmatpush1.msra.mxu0 0.0
    %793 = vmatprep.subr.mxu0 0.0
    %794 = vmatpush1.msra.mxu0 0.0
    %795 = vmatprep.subr.mxu0 0.0
    %796 = vmatpush1.msra.mxu0 0.0
    %797 = vmatprep.subr.mxu0 0.0
    %798 = vmatpush1.msra.mxu0 0.0
    %799 = vmatprep.subr.mxu0 0.0
    %800 = vmatpush1.msra.mxu0 0.0
    %801 = vmatprep.subr.mxu0 0.0
    %802 = vmatpush1.msra.mxu0 0.0
    %803 = vmatprep.subr.mxu0 0.0
    %804 = vmatpush1.msra.mxu0 0.0
    %805 = vmatprep.subr.mxu0 0.0
    %806 = vmatpush1.msra.mxu0 0.0
    %807 = vmatprep.subr.mxu0 0.0
    %808 = vmatpush1.msra.mxu0 0.0
    %809 = vmatprep.subr.mxu0 0.0
    %810 = vmatpush1.msra.mxu0 %v707
    %811 = vmatprep.subr.mxu0 0.0
    %812 = vmatpush1.msra.mxu0 %v706
    %813 = vmatprep.subr.mxu0 0.0
    %814 = vmatpush1.msra.mxu0 %v705
    %815 = vmatprep.subr.mxu0 0.0
    %816 = vmatpush1.msra.mxu0 %v704
    %817 = vmatprep.subr.mxu0 0.0
    %818 = vmatpush1.msra.mxu0 %v703
    %819 = vmatprep.subr.mxu0 0.0
    %820 = vmatpush1.msra.mxu0 %v702
    %821 = vmatprep.subr.mxu0 0.0
    %822 = vmatpush2.msra.mxu0 0.0
    %823 = vmatprep.subr.mxu0 0.0
    %824 = vmatpush2.msra.mxu0 0.0
    %825 = vmatprep.subr.mxu0 0.0
    %826 = vmatpush2.msra.mxu0 0.0
    %827 = vmatprep.subr.mxu0 0.0
    %828 = vmatpush2.msra.mxu0 0.0
    %829 = vmatprep.subr.mxu0 0.0
    %830 = vmatpush2.msra.mxu0 0.0
    %831 = vmatprep.subr.mxu0 0.0
    %832 = vmatpush2.msra.mxu0 0.0
    %833 = vmatprep.subr.mxu0 0.0
    %834 = vmatpush2.msra.mxu0 0.0
    %835 = vmatprep.subr.mxu0 0.0
    %836 = vmatpush2.msra.mxu0 0.0
    %837 = vmatprep.subr.mxu0 0.0
    %838 = vmatpush2.msra.mxu0 0.0
    %839 = vmatprep.subr.mxu0 0.0
    %840 = vmatpush2.msra.mxu0 0.0
    %841 = vmatprep.subr.mxu0 0.0
    %842 = vmatpush2.msra.mxu0 0.0
    %843 = vmatprep.subr.mxu0 0.0
    %844 = vmatpush2.msra.mxu0 0.0
    %845 = vmatprep.subr.mxu0 0.0
    %846 = vmatpush2.msra.mxu0 0.0
    %847 = vmatprep.subr.mxu0 0.0
    %848 = vmatpush2.msra.mxu0 0.0
    %849 = vmatprep.subr.mxu0 0.0
    %850 = vmatpush2.msra.mxu0 0.0
    %851 = vmatprep.subr.mxu0 0.0
    %852 = vmatpush2.msra.mxu0 0.0
    %853 = vmatprep.mubr.f32.mxu0 0.0
    %854 = vmatmul.mubr.f32.gmra.mxu0 %v787
    %v855 = vpop.f32.mrf.mxu0
    %v856 = vadd.f32 %v782, %v855
    %v857 = vpop.f32.mrf.mxu0
    %858 = vdwg.mxu0
    %v859 = vlaneseq
    %v860 = vshrl.u32 %v859, 7
    %v861 = vsub.s32 0, %v860
    %v862 = vrot.slane %v710, %v861
    %v863 = vadd.f32 %v856, %v862
    %v864 = vmax.f32 %v863, 0.0
    %v865 = vld [vmem:[#allocation2 + $0xc8] sm:$0xff]
    %v866 = vld [vmem:[#allocation2 + $0xd0] sm:$0xff]
    %v867 = vld [vmem:[#allocation2 + $0xd8] sm:$0xff]
    %v868 = vld [vmem:[%s4 + $0x4] sm:$0x1]
    %v869 = vlaneseq
    %v870 = vshrl.u32 %v869, 7
    %v871 = vsub.s32 0, %v870
    %v872 = vrot.slane %v868, %v871
    %vm873 = vcmask 195584
    %v875 = vsel %vm873, %v864, 0
    %877 = vmatprep.subr.mxu0 0.0
    %878 = vmatpush1.msra.mxu0 0.0
    %879 = vmatprep.subr.mxu0 0.0
    %880 = vmatpush1.msra.mxu0 0.0
    %881 = vmatprep.subr.mxu0 0.0
    %882 = vmatpush1.msra.mxu0 0.0
    %883 = vmatprep.subr.mxu0 0.0
    %884 = vmatpush1.msra.mxu0 0.0
    %885 = vmatprep.subr.mxu0 0.0
    %886 = vmatpush1.msra.mxu0 0.0
    %887 = vmatprep.subr.mxu0 0.0
    %888 = vmatpush1.msra.mxu0 0.0
    %889 = vmatprep.subr.mxu0 0.0
    %890 = vmatpush1.msra.mxu0 0.0
    %891 = vmatprep.subr.mxu0 0.0
    %892 = vmatpush1.msra.mxu0 0.0
    %893 = vmatprep.subr.mxu0 0.0
    %894 = vmatpush1.msra.mxu0 0.0
    %895 = vmatprep.subr.mxu0 0.0
    %896 = vmatpush1.msra.mxu0 0.0
    %897 = vmatprep.subr.mxu0 0.0
    %898 = vmatpush1.msra.mxu0 0.0
    %899 = vmatprep.subr.mxu0 0.0
    %900 = vmatpush1.msra.mxu0 0.0
    %901 = vmatprep.subr.mxu0 0.0
    %902 = vmatpush1.msra.mxu0 0.0
    %903 = vmatprep.subr.mxu0 0.0
    %904 = vmatpush1.msra.mxu0 %v867
    %905 = vmatprep.subr.mxu0 0.0
    %906 = vmatpush1.msra.mxu0 %v866
    %907 = vmatprep.subr.mxu0 0.0
    %908 = vmatpush1.msra.mxu0 %v865
    %909 = vmatprep.subr.mxu0 0.0
    %910 = vmatpush2.msra.mxu0 0.0
    %911 = vmatprep.subr.mxu0 0.0
    %912 = vmatpush2.msra.mxu0 0.0
    %913 = vmatprep.subr.mxu0 0.0
    %914 = vmatpush2.msra.mxu0 0.0
    %915 = vmatprep.subr.mxu0 0.0
    %916 = vmatpush2.msra.mxu0 0.0
    %917 = vmatprep.subr.mxu0 0.0
    %918 = vmatpush2.msra.mxu0 0.0
    %919 = vmatprep.subr.mxu0 0.0
    %920 = vmatpush2.msra.mxu0 0.0
    %921 = vmatprep.subr.mxu0 0.0
    %922 = vmatpush2.msra.mxu0 0.0
    %923 = vmatprep.subr.mxu0 0.0
    %924 = vmatpush2.msra.mxu0 0.0
    %925 = vmatprep.subr.mxu0 0.0
    %926 = vmatpush2.msra.mxu0 0.0
    %927 = vmatprep.subr.mxu0 0.0
    %928 = vmatpush2.msra.mxu0 0.0
    %929 = vmatprep.subr.mxu0 0.0
    %930 = vmatpush2.msra.mxu0 0.0
    %931 = vmatprep.subr.mxu0 0.0
    %932 = vmatpush2.msra.mxu0 0.0
    %933 = vmatprep.subr.mxu0 0.0
    %934 = vmatpush2.msra.mxu0 0.0
    %935 = vmatprep.subr.mxu0 0.0
    %936 = vmatpush2.msra.mxu0 0.0
    %937 = vmatprep.subr.mxu0 0.0
    %938 = vmatpush2.msra.mxu0 0.0
    %939 = vmatprep.subr.mxu0 0.0
    %940 = vmatpush2.msra.mxu0 0.0
    %941 = vmatprep.mubr.f32.mxu0 0.0
    %942 = vmatmul.mubr.f32.gmra.mxu0 %v875
    %v943 = vpop.f32.mrf.mxu0
    %v944 = vadd.f32 %v872, %v943
    %v945 = vpop.f32.mrf.mxu0
    %946 = vdwg.mxu0
    %vm947 = vcmask 23552
    %948 = vst.msk [vmem:[%s5] sm:$0xff] %vm947, %v944
    // Predicated region
    $region26: #{net_forward.1} parent=1 // pred_check
      _
    $region27: #{net_forward.1} parent=1 // pred_check_branch
      %950 = sbr.rel (0) target = $region29
    $region28: #{net_forward.1} parent=1 // pred_region
      _
    $region29: #{net_forward.1} parent=1 // pred_fallthru
      _
    // Predicated region
    $region30: #{net_forward.1} parent=1 // pred_check
      _
    $region31: #{net_forward.1} parent=1 // pred_check_branch
      %952 = sbr.rel (0) target = $region33
    $region32: #{net_forward.1} parent=1 // pred_region
      _
    $region33: #{net_forward.1} parent=1 // pred_fallthru
      _
    %953 = vsyncpa [#allocation3], 1

</llo_original>
